<compile_context>
chip_gen: v7x
topology: tpu7x:2x2x1
jax: 0.10.0
libtpu: 0.0.40
codegen_flags: <defaults>
</compile_context>

<pallas_src>
import jax
import jax.numpy as jnp
from jax.experimental import pallas as pl
from jax.experimental.pallas import tpu as pltpu


def _vector_norm_kernel(x_ref, o_ref, acc_ref):
    """Accumulate sum(|x|^3) over blocks of B*C rows; finalize with cube root."""
    i = pl.program_id(0)

    @pl.when(i == 0)
    def _():
        acc_ref[...] = jnp.zeros_like(acc_ref)

    x = x_ref[...].astype(jnp.float32)          # (T_BC, H*W) tile
    # x * x * |x| == |x|^3, but uses VALU (2 mul + abs) instead of the EUP pow.
    acc_ref[...] += jnp.sum(x * x * jnp.abs(x), axis=0, keepdims=True)

    @pl.when(i == pl.num_programs(0) - 1)
    def _():
        # Single pow at finalize (once per kernel) -> negligible EUP cost.
        o_ref[...] = (acc_ref[...] ** (1.0 / 3.0)).astype(o_ref.dtype)


def _pick_block_rows(n_rows, row_bytes, target_block_bytes=8 << 20):
    """Pick a row-block size that (a) keeps the double-buffered input block in
    the few-MiB range, (b) divides n_rows exactly so no masked/padded partial
    blocks enter the reduction, and (c) respects the (8, 128) sublane tiling
    constraint (multiple of 8, or the full axis)."""
    if n_rows * row_bytes <= target_block_bytes:
        return n_rows
    cap = max(8, int(target_block_bytes // row_bytes))
    cap -= cap % 8
    cap = max(cap, 8)
    t = cap
    while t >= 8:
        if n_rows % t == 0:
            return t
        t -= 8
    # Fallback for awkward shapes: take the whole axis in one block.
    return n_rows


def linalg_vector_norm_ord3_dim01(x):
    """torch.ops.aten.linalg_vector_norm(x, ord=3.0, dim=[0, 1], keepdim=False)
    for a 4-D input (B, C, H, W) -> (H, W)."""
    B, C, H, W = x.shape
    n_rows = B * C
    hw = H * W

    # Contiguous NCHW -> free reshape to a lane-dense 2-D view.
    x2 = x.reshape(n_rows, hw)

    row_bytes = hw * jnp.dtype(x.dtype).itemsize
    t_bc = _pick_block_rows(n_rows, row_bytes)
    grid = (n_rows // t_bc if n_rows % t_bc == 0 else pl.cdiv(n_rows, t_bc),)

    in_spec = pl.BlockSpec((t_bc, hw), lambda i: (i, 0))
    out_spec = pl.BlockSpec((1, hw), lambda i: (0, 0))

    out2 = pl.pallas_call(
        _vector_norm_kernel,
        out_shape=jax.ShapeDtypeStruct((1, hw), x.dtype),
        grid_spec=pltpu.PrefetchScalarGridSpec(
            num_scalar_prefetch=0,
            grid=grid,
            in_specs=[in_spec],
            out_specs=out_spec,
            scratch_shapes=[pltpu.VMEM((1, hw), jnp.float32)],
        ),
        compiler_params=pltpu.CompilerParams(
            dimension_semantics=("arbitrary",),
            # Double-buffered ~8 MiB input blocks + tiny acc/out: well under
            # 48 MiB, which is safe on v5e/v6e (128 MiB) and v7x (64 MiB).
            vmem_limit_bytes=48 << 20,
        ),
    )(x2)

    return out2.reshape(H, W)


if __name__ == "__main__":
    key = jax.random.PRNGKey(0)
    x = jax.random.normal(key, (2, 4, 16, 16), dtype=jnp.float32)

    out = linalg_vector_norm_ord3_dim01(x)
    jax.block_until_ready(out)

    # Reference check in plain JAX.
    ref = jnp.sum(jnp.abs(x) ** 3.0, axis=(0, 1)) ** (1.0 / 3.0)
    assert out.shape == ref.shape == (16, 16)
    assert jnp.allclose(out, ref, rtol=1e-5, atol=1e-5)

    print("KERNEL_OK")
</pallas_src>

<mosaic_0001>
module attributes {stable_mosaic.version = 11 : i64} {
  func.func @_vector_norm_kernel(%arg0: i32, %arg1: memref<8x256xf32, #tpu.memory_space<vmem>>, %arg2: memref<1x256xf32, #tpu.memory_space<vmem>>, %arg3: memref<1x256xf32, #tpu.memory_space<vmem>>) attributes {dimension_semantics = [#tpu.dimension_semantics<arbitrary>], iteration_bounds = array<i64: 1>, scalar_prefetch = 0 : i64, scratch_operands = 1 : i64, tpu.core_type = #tpu.core_type<tc>, window_params = [{transform_indices = @transform_0, window_bounds = array<i64: 8, 256>}, {pipeline_mode = #tpu.pipeline_mode<synchronous>, transform_indices = @transform_1, window_bounds = array<i64: 1, 256>}]} {
    %c0_i32 = arith.constant 0 : i32
    %0 = arith.cmpi eq, %arg0, %c0_i32 : i32
    %1 = arith.extui %0 : i1 to i32
    %c0_i32_0 = arith.constant 0 : i32
    %2 = arith.cmpi ne, %1, %c0_i32_0 : i32
    scf.if %2 {
      %cst_8 = arith.constant 0.000000e+00 : f32
      %15 = vector.broadcast %cst_8 : f32 to vector<1x256xf32>
      %c0_9 = arith.constant 0 : index
      %c0_10 = arith.constant 0 : index
      %16 = vector.load %arg3[%c0_9, %c0_10] : memref<1x256xf32, #tpu.memory_space<vmem>>, vector<1x256xf32>
      tpu.vector_store %arg3[%c0_9, %c0_10], %15 {strides = array<i32>} : memref<1x256xf32, #tpu.memory_space<vmem>>, vector<1x256xf32>,
    } else {
    }
    %c0 = arith.constant 0 : index
    %c0_1 = arith.constant 0 : index
    %3 = vector.load %arg1[%c0, %c0_1] : memref<8x256xf32, #tpu.memory_space<vmem>>, vector<8x256xf32>
    %c0_2 = arith.constant 0 : index
    %c0_3 = arith.constant 0 : index
    %4 = vector.load %arg3[%c0_2, %c0_3] : memref<1x256xf32, #tpu.memory_space<vmem>>, vector<1x256xf32>
    %5 = arith.mulf %3, %3 : vector<8x256xf32>
    %6 = math.absf %3 : vector<8x256xf32>
    %7 = arith.mulf %5, %6 : vector<8x256xf32>
    %cst = arith.constant dense<0.000000e+00> : vector<256xf32>
    %8 = vector.multi_reduction <add>, %7, %cst [0] : vector<8x256xf32> to vector<256xf32>
    %9 = vector.shape_cast %8 : vector<256xf32> to vector<1x256xf32>
    %10 = arith.addf %4, %9 : vector<1x256xf32>
    %c0_4 = arith.constant 0 : index
    %c0_5 = arith.constant 0 : index
    %11 = vector.load %arg3[%c0_4, %c0_5] : memref<1x256xf32, #tpu.memory_space<vmem>>, vector<1x256xf32>
    tpu.vector_store %arg3[%c0_4, %c0_5], %10 {strides = array<i32>} : memref<1x256xf32, #tpu.memory_space<vmem>>, vector<1x256xf32>,
    %c0_i32_6 = arith.constant 0 : i32
    %12 = arith.cmpi eq, %arg0, %c0_i32_6 : i32
    %13 = arith.extui %12 : i1 to i32
    %c0_i32_7 = arith.constant 0 : i32
    %14 = arith.cmpi ne, %13, %c0_i32_7 : i32
    scf.if %14 {
      %c0_8 = arith.constant 0 : index
      %c0_9 = arith.constant 0 : index
      %15 = vector.load %arg3[%c0_8, %c0_9] : memref<1x256xf32, #tpu.memory_space<vmem>>, vector<1x256xf32>
      %cst_10 = arith.constant 0.333333343 : f32
      %16 = vector.broadcast %cst_10 : f32 to vector<1x256xf32>
      %17 = math.powf %15, %16 : vector<1x256xf32>
      %c0_11 = arith.constant 0 : index
      %c0_12 = arith.constant 0 : index
      %18 = vector.load %arg2[%c0_11, %c0_12] : memref<1x256xf32, #tpu.memory_space<vmem>>, vector<1x256xf32>
      tpu.vector_store %arg2[%c0_11, %c0_12], %17 {strides = array<i32>} : memref<1x256xf32, #tpu.memory_space<vmem>>, vector<1x256xf32>,
    } else {
    }
    return
  }
  func.func @transform_0(%arg0: i32) -> (i32, i32) {
    %c0_i32 = arith.constant 0 : i32
    %c0_i32_0 = arith.constant 0 : i32
    return %arg0, %c0_i32 : i32, i32
  }
  func.func @transform_1(%arg0: i32) -> (i32, i32) {
    %c0_i32 = arith.constant 0 : i32
    %c0_i32_0 = arith.constant 0 : i32
    %c0_i32_1 = arith.constant 0 : i32
    return %c0_i32, %c0_i32_0 : i32, i32
  }
}

</mosaic_0001>

<llo_original>
// kernel: tpu_custom_call.1
$region0: #{tpu_custom_call.1}
  #allocation0 [shape = 'u32[]', space=smem, size = 0x4, offset = 0x4, fixed_abs, tag = 'smem constant byte address 0x4 - core index']
  #allocation1 [shape = 'u32[144,128]{1,0:T(1,128)}', space=vmem, size = 0x12000, scoped, tag = 'internal scratch']
  #allocation2 [shape = 'f32[1,256]{1,0:T(1,128)}', space=vmem, size = 0x400, scoped, tag = 'scratch operand']
  %s0 = inlined_call_operand.hbm [shape: f32[8,256], index: 0, kind: input, shape index: {}]
  %s1 = inlined_call_operand.hbm [shape: f32[1,256], index: 1, kind: output, shape index: {}]
  %s2 = sld [smem:[#allocation0]]
  $region26: #{tpu_custom_call.1} parent=0
    _
  %s4 = ssub.s32 1, %s2
  %s5 = scalar_select 0, %s4, %s2
  $region1: #{tpu_custom_call.1} parent=0
    #allocation3 [shape = 'u8[8192]{0}', space=vmem, size = 0x2000, scoped, tag = 'input window, operand 0, single buffered']
    #allocation4 [shape = 's32[1]{0}', space=sflag, size = 0x4, scoped, tag = 'scoped memory for tpu_custom_call.1']
    #allocation5 [shape = 's32[1]{0}', space=sflag, size = 0x4, scoped, tag = 'scoped memory for tpu_custom_call.1']
    #allocation6 [shape = 'u8[1024]{0}', space=vmem, size = 0x400, scoped, tag = 'output window, operand 0, single buffered']
    %6 = vsyncpa [#allocation4], 0
    %7 = vsyncpa [#allocation5], 0
    // Predicated region
    $region2: #{tpu_custom_call.1} parent=1 // pred_check
      _
    $region3: #{tpu_custom_call.1} parent=1 // pred_check_branch
      %9 = sbr.rel (0) target = $region5
    $region4: #{tpu_custom_call.1} parent=1 // pred_region
      %s11 = ssub.s32 256, 256
      %12 = vsyncadd [#allocation4], %s11
      %s14 = sshll.u32 [#allocation3], 4
      %s15 = int_to_ptr.vmem [resolvable:$true] %s14
      %17 = dma.hbm_to_vmem [thread:$0]  %s0, 256, %s15, [#allocation4]
    $region5: #{tpu_custom_call.1} parent=1 // pred_fallthru
      _
    // Predicated region
    $region6: #{tpu_custom_call.1} parent=1 // pred_check
      _
    $region7: #{tpu_custom_call.1} parent=1 // pred_check_branch
      %19 = sbr.rel (0) target = $region9
    $region8: #{tpu_custom_call.1} parent=1 // pred_region
      %20 = dma.done [#allocation4], 256
    $region9: #{tpu_custom_call.1} parent=1 // pred_fallthru
      _
    %p21 = scmp.eq.s32.totalorder 0, 0
    // Predicated region
    $region10: #{tpu_custom_call.1} parent=1 // pred_check
      %p22 = pneg %p21
    $region11: #{tpu_custom_call.1} parent=1 // pred_check_branch
      %24 = sbr.rel (%p22) target = $region13
    $region12: #{tpu_custom_call.1} parent=1 // pred_region
      %v25 = vlaneseq
      %vm26 = vcmp.ge.s32.totalorder %v25, 0
      %vm27 = vcmp.lt.s32.totalorder %v25, 256
      %vm28 = vmand %vm26, %vm27
      %29 = vst.msk [vmem:[#allocation2] sm:$0x3] %vm28, 0.0
    $region13: #{tpu_custom_call.1} parent=1 // pred_fallthru
      _
    %v30 = vld [vmem:[#allocation3] sm:$0xff]
    %v31 = vld [vmem:[#allocation3 + $0x8] sm:$0xff]
    %v32 = vld [vmem:[#allocation2] sm:$0x3]
    %v33 = vmul.f32 %v30, %v30
    %v34 = vmul.f32 %v31, %v31
    %v35 = vand.u32 2147483647, %v30
    %v36 = vand.u32 2147483647, %v31
    %v37 = vmul.f32 %v33, %v35
    %v38 = vmul.f32 %v34, %v36
    %v39 = vrot.slane %v37, 4
    %v40 = vadd.f32 %v37, %v39
    %v41 = vrot.slane %v40, 2
    %v42 = vadd.f32 %v40, %v41
    %v43 = vrot.slane %v42, 1
    %v44 = vadd.f32 %v42, %v43
    %v45 = vrot.slane %v38, 4
    %v46 = vadd.f32 %v38, %v45
    %v47 = vrot.slane %v46, 2
    %v48 = vadd.f32 %v46, %v47
    %v49 = vrot.slane %v48, 1
    %v50 = vadd.f32 %v48, %v49
    %v53 = vcombine.low %v44, %v50
    %v55 = vunpack.c.l.s4 1966171168
    %v56 = vunpack.c.0.s8 %v55
    %v57 = vlaneseq
    %v58 = vshrl.u32 %v57, 7
    %v59 = vsub.s32 %v56, %v58
    %v60 = vrot.slane %v53, %v59
    %v62 = vunpack.c.l.s4 1966171168
    %v63 = vunpack.c.0.s8 %v62
    %v64 = vlaneseq
    %v65 = vshrl.u32 %v64, 7
    %v66 = vsub.s32 %v63, %v65
    %v67 = vrot.slane %v60, %v66
    %v69 = vadd.f32 %v32, %v67
    %v70 = vlaneseq
    %vm71 = vcmp.ge.s32.totalorder %v70, 0
    %vm72 = vcmp.lt.s32.totalorder %v70, 256
    %vm73 = vmand %vm71, %vm72
    %74 = vst.msk [vmem:[#allocation2] sm:$0x3] %vm73, %v69
    // Predicated region
    $region14: #{tpu_custom_call.1} parent=1 // pred_check
      %p75 = pneg %p21
    $region15: #{tpu_custom_call.1} parent=1 // pred_check_branch
      %77 = sbr.rel (%p75) target = $region17
    $region16: #{tpu_custom_call.1} parent=1 // pred_region
      %v78 = vld [vmem:[#allocation2] sm:$0x3]
      %v79 = vpow.f32 %v78, 0.33333334
      %80 = vst.msk [vmem:[#allocation6] sm:$0x3] %vm73, %v79
    $region17: #{tpu_custom_call.1} parent=1 // pred_fallthru
      _
    // Predicated region
    $region18: #{tpu_custom_call.1} parent=1 // pred_check
      _
    $region19: #{tpu_custom_call.1} parent=1 // pred_check_branch
      %82 = sbr.rel (0) target = $region21
    $region20: #{tpu_custom_call.1} parent=1 // pred_region
      %s84 = ssub.s32 32, 32
      %85 = vsyncadd [#allocation5], %s84
      %s87 = sshll.u32 [#allocation6], 4
      %s88 = int_to_ptr.vmem [resolvable:$true] %s87
      %90 = dma.vmem_to_hbm [thread:$0]  %s88, 32, %s1, [#allocation5]
    $region21: #{tpu_custom_call.1} parent=1 // pred_fallthru
      _
    // Predicated region
    $region22: #{tpu_custom_call.1} parent=1 // pred_check
      _
    $region23: #{tpu_custom_call.1} parent=1 // pred_check_branch
      %92 = sbr.rel (0) target = $region25
    $region24: #{tpu_custom_call.1} parent=1 // pred_region
      %93 = dma.done [#allocation5], 32
    $region25: #{tpu_custom_call.1} parent=1 // pred_fallthru
      _
    %94 = vsyncpa [#allocation4], 1
    %95 = vsyncpa [#allocation5], 1

</llo_original>
